<compile_context>
chip_gen: v6e
topology: v6e:2x2x1
jax: 0.10.0
libtpu: 0.0.40
codegen_flags: <defaults>
</compile_context>

<pallas_src>
import functools

import jax
import jax.numpy as jnp
from jax.experimental import pallas as pl
from jax.experimental.pallas import tpu as pltpu


def _scaled_tanh_kernel(scale_ref, x_ref, o_ref):
    # Elementwise hot path: tanh on the EUP + scalar multiply on the VPU.
    # Compute in f32 (exact for f32 inputs, better rounding for bf16); the
    # casts and the math are fully hidden under the HBM<->VMEM DMA.
    xf = x_ref[...].astype(jnp.float32)
    o_ref[...] = (scale_ref[0] * jnp.tanh(xf)).astype(o_ref.dtype)


@functools.lru_cache(maxsize=None)
def _tile_config():
    """Generation-aware (tile_bytes, vmem_limit_bytes)."""
    try:
        vmem_cap = int(pltpu.get_tpu_info().vmem_capacity_bytes)
    except Exception:  # non-TPU backend / older runtime: conservative default
        return 2 * 1024 * 1024, None
    if vmem_cap <= 64 * 1024 * 1024:
        # v7x-class: 64 MiB VMEM per TC, ~3.2 TB/s HBM -> big tiles amortize
        # the fixed ~0.35us per-grid-step overhead.
        tile = 8 * 1024 * 1024
    else:
        # v5e/v6e-class: 128 MiB VMEM, 0.8-1.4 TB/s HBM; ~4 MiB is already at
        # the measured HBM-roofline plateau.
        tile = 4 * 1024 * 1024
    # 2x in + 2x out double-buffers plus slack, well under physical VMEM.
    vmem_limit = min(4 * tile + (8 << 20), vmem_cap - (8 << 20))
    return tile, vmem_limit


def scaled_tanh(x, scale_factor):
    """Apply scale_factor * tanh(x) elementwise via a Pallas TPU kernel."""
    orig_shape = x.shape
    dtype = x.dtype
    n = x.size
    if n == 0:
        return x
    itemsize = jnp.dtype(dtype).itemsize
    tile_bytes, vmem_limit = _tile_config()

    # Runtime scalar in SMEM -> changing the scale never retriggers a compile.
    scale = jnp.asarray(scale_factor, dtype=jnp.float32).reshape(1)
    flat = x.reshape(-1)

    compiler_params = pltpu.CompilerParams(
        dimension_semantics=("parallel",),
        vmem_limit_bytes=vmem_limit,
    )
    cost = pl.CostEstimate(
        flops=n,                          # the scalar multiply
        transcendentals=n,                # tanh on the EUP
        bytes_accessed=2 * n * itemsize,  # one read + one write of x
    )

    # Lane-dense layout: widest last dim that divides n exactly, so every DMA
    # is a single contiguous transfer and every store is unmasked.
    lane = next((c for c in (1024, 512, 256, 128) if n % c == 0), None)

    if lane is not None:
        rows = n // lane
        x2d = flat.reshape(rows, lane)
        # Sublane granularity by dtype packing (f32: 8, bf16: 16, i8/fp8: 32).
        sub = {4: 8, 2: 16, 1: 32}.get(itemsize, 8)
        target_rows = max(sub, (tile_bytes // (lane * itemsize)) // sub * sub)
        if rows > target_rows:
            block_rows = target_rows
        elif rows >= 2 * sub:
            # Split mid-sized arrays into >=2 blocks so the "parallel" grid
            # axis can shard across both TensorCores on v7x.
            block_rows = (-(-rows // 2) + sub - 1) // sub * sub
        else:
            block_rows = rows  # block == full array dim is always legal
        grid = (pl.cdiv(rows, block_rows),)

        out = pl.pallas_call(
            _scaled_tanh_kernel,
            out_shape=jax.ShapeDtypeStruct((rows, lane), dtype),
            grid_spec=pltpu.PrefetchScalarGridSpec(
                num_scalar_prefetch=0,
                grid=grid,
                in_specs=[
                    pl.BlockSpec(memory_space=pltpu.MemorySpace.SMEM),
                    pl.BlockSpec((block_rows, lane), lambda i: (i, 0)),
                ],
                out_specs=pl.BlockSpec((block_rows, lane), lambda i: (i, 0)),
            ),
            compiler_params=compiler_params,
            cost_estimate=cost,
        )(scale, x2d)
        return out.reshape(orig_shape)

    # Ragged case (n % 128 != 0): stay 1-D; no jnp.pad / slice round-trip.
    if n * itemsize <= tile_bytes:
        block = n  # single grid step; block == full array dim is legal
    else:
        # Tile-aligned (8*128-element) blocks; Pallas masks the out-of-bounds
        # stores of the ragged last block.
        block = max(1024, (tile_bytes // itemsize) // 1024 * 1024)
    grid = (pl.cdiv(n, block),)

    out = pl.pallas_call(
        _scaled_tanh_kernel,
        out_shape=jax.ShapeDtypeStruct((n,), dtype),
        grid_spec=pltpu.PrefetchScalarGridSpec(
            num_scalar_prefetch=0,
            grid=grid,
            in_specs=[
                pl.BlockSpec(memory_space=pltpu.MemorySpace.SMEM),
                pl.BlockSpec((block,), lambda i: (i,)),
            ],
            out_specs=pl.BlockSpec((block,), lambda i: (i,)),
        ),
        compiler_params=compiler_params,
        cost_estimate=cost,
    )(scale, flat)
    return out.reshape(orig_shape)


if __name__ == "__main__":
    key = jax.random.PRNGKey(0)
    scale_factor = 2.5  # module hyperparameter (set deterministically)

    # Typical NCHW activation -> lane-aligned 2-D fast path.
    x = jax.random.normal(key, (2, 4, 16, 16), dtype=jnp.float32)
    out = jax.block_until_ready(scaled_tanh(x, scale_factor))
    ref = scale_factor * jnp.tanh(x)
    assert out.shape == x.shape and out.dtype == x.dtype
    assert jnp.allclose(out, ref, atol=1e-4, rtol=1e-4)

    # bf16 input: f32 compute in-kernel, cast on store.
    xb = x.astype(jnp.bfloat16)
    outb = jax.block_until_ready(scaled_tanh(xb, scale_factor))
    refb = (scale_factor * jnp.tanh(xb.astype(jnp.float32))).astype(jnp.bfloat16)
    assert outb.shape == xb.shape and outb.dtype == xb.dtype
    assert jnp.allclose(outb.astype(jnp.float32), refb.astype(jnp.float32),
                        atol=2e-2, rtol=2e-2)

    # Ragged size (n % 128 != 0): 1-D path, no host-side pad/slice copies.
    xr = jax.random.normal(jax.random.PRNGKey(0), (3, 5, 7), dtype=jnp.float32)
    outr = jax.block_until_ready(scaled_tanh(xr, scale_factor))
    refr = scale_factor * jnp.tanh(xr)
    assert outr.shape == xr.shape and outr.dtype == xr.dtype
    assert jnp.allclose(outr, refr, atol=1e-4, rtol=1e-4)

    print("KERNEL_OK")
</pallas_src>

<mosaic_0001>
module attributes {stable_mosaic.version = 11 : i64} {
  func.func @_scaled_tanh_kernel(%arg0: i32, %arg1: memref<1xf32, #tpu.memory_space<smem>>, %arg2: memref<2x1024xf32, #tpu.memory_space<vmem>>, %arg3: memref<2x1024xf32, #tpu.memory_space<vmem>>) attributes {dimension_semantics = [#tpu.dimension_semantics<parallel>], iteration_bounds = array<i64: 1>, scalar_prefetch = 0 : i64, scratch_operands = 0 : i64, tpu.core_type = #tpu.core_type<tc>, window_params = [{transform_indices = @transform_0, window_bounds = array<i64: 1>}, {transform_indices = @transform_1, window_bounds = array<i64: 2, 1024>}, {transform_indices = @transform_2, window_bounds = array<i64: 2, 1024>}]} {
    %c0 = arith.constant 0 : index
    %c0_0 = arith.constant 0 : index
    %0 = vector.load %arg2[%c0, %c0_0] : memref<2x1024xf32, #tpu.memory_space<vmem>>, vector<2x1024xf32>
    %c0_1 = arith.constant 0 : index
    %1 = memref.load %arg1[%c0_1] : memref<1xf32, #tpu.memory_space<smem>>
    %2 = math.tanh %0 : vector<2x1024xf32>
    %3 = vector.broadcast %1 : f32 to vector<2x1024xf32>
    %4 = arith.mulf %3, %2 : vector<2x1024xf32>
    %c0_2 = arith.constant 0 : index
    %c0_3 = arith.constant 0 : index
    %5 = vector.load %arg3[%c0_2, %c0_3] : memref<2x1024xf32, #tpu.memory_space<vmem>>, vector<2x1024xf32>
    tpu.vector_store %arg3[%c0_2, %c0_3], %4 {strides = array<i32>} : memref<2x1024xf32, #tpu.memory_space<vmem>>, vector<2x1024xf32>,
    return
  }
  func.func @transform_0(%arg0: i32) -> i32 {
    %c0_i32 = arith.constant 0 : i32
    %c0_i32_0 = arith.constant 0 : i32
    return %c0_i32 : i32
  }
  func.func @transform_1(%arg0: i32) -> (i32, i32) {
    %c0_i32 = arith.constant 0 : i32
    %c0_i32_0 = arith.constant 0 : i32
    return %arg0, %c0_i32 : i32, i32
  }
  func.func @transform_2(%arg0: i32) -> (i32, i32) {
    %c0_i32 = arith.constant 0 : i32
    %c0_i32_0 = arith.constant 0 : i32
    return %arg0, %c0_i32 : i32, i32
  }
}

</mosaic_0001>

<llo_original>
// kernel: tpu_custom_call.1
$region0: #{tpu_custom_call.1}
  #allocation0 [shape = 'u32[]', space=smem, size = 0x4, offset = 0x4, fixed_abs, tag = 'smem constant byte address 0x4 - core index']
  #allocation1 [shape = 'u32[144,128]{1,0:T(1,128)}', space=vmem, size = 0x12000, scoped, tag = 'internal scratch']
  #allocation2 [shape = 'f32[1]{0:T(128)S(6)}', space=smem, size = 0x200, scoped, tag = 'scoped memory for tpu_custom_call.1']
  %s0 = inlined_call_operand.<no memory space> [shape: f32[1], index: 0, kind: input, shape index: {}]
  %s1 = inlined_call_operand.hbm [shape: f32[2,1024], index: 1, kind: input, shape index: {}]
  %s2 = inlined_call_operand.hbm [shape: f32[2,1024], index: 2, kind: output, shape index: {}]
  %s3 = sld [smem:[#allocation0]]
  $region22: #{tpu_custom_call.1} parent=0
    _
  %s5 = ssub.s32 1, %s3
  %s6 = scalar_select 0, %s5, %s3
  %7 = sst [smem:[#allocation2]] %s0
  $region1: #{tpu_custom_call.1} parent=0
    #allocation3 [shape = 'u8[8192]{0}', space=vmem, size = 0x2000, scoped, tag = 'input window, operand 1, single buffered']
    #allocation4 [shape = 's32[1]{0}', space=sflag, size = 0x4, scoped, tag = 'scoped memory for tpu_custom_call.1']
    #allocation5 [shape = 's32[1]{0}', space=sflag, size = 0x4, scoped, tag = 'scoped memory for tpu_custom_call.1']
    #allocation6 [shape = 'u8[8192]{0}', space=vmem, size = 0x2000, scoped, tag = 'output window, operand 0, single buffered']
    %8 = vsyncpa [#allocation4], 0
    %9 = vsyncpa [#allocation5], 0
    // Predicated region
    $region2: #{tpu_custom_call.1} parent=1 // pred_check
      _
    $region3: #{tpu_custom_call.1} parent=1 // pred_check_branch
      %11 = sbr.rel (0) target = $region5
    $region4: #{tpu_custom_call.1} parent=1 // pred_region
      _
    $region5: #{tpu_custom_call.1} parent=1 // pred_fallthru
      _
    // Predicated region
    $region6: #{tpu_custom_call.1} parent=1 // pred_check
      _
    $region7: #{tpu_custom_call.1} parent=1 // pred_check_branch
      %13 = sbr.rel (0) target = $region9
    $region8: #{tpu_custom_call.1} parent=1 // pred_region
      %s15 = ssub.s32 256, 256
      %16 = vsyncadd [#allocation4], %s15
      %s18 = sshll.u32 [#allocation3], 4
      %s19 = int_to_ptr.vmem [resolvable:$true] %s18
      %21 = dma.hbm_to_vmem [thread:$0]  %s1, 256, %s19, [#allocation4]
    $region9: #{tpu_custom_call.1} parent=1 // pred_fallthru
      _
    // Predicated region
    $region10: #{tpu_custom_call.1} parent=1 // pred_check
      _
    $region11: #{tpu_custom_call.1} parent=1 // pred_check_branch
      %23 = sbr.rel (0) target = $region13
    $region12: #{tpu_custom_call.1} parent=1 // pred_region
      %24 = dma.done [#allocation4], 256
    $region13: #{tpu_custom_call.1} parent=1 // pred_fallthru
      _
    %v25 = vld [vmem:[#allocation3] sm:$0xff]
    %v26 = vld [vmem:[#allocation3 + $0x8] sm:$0xff]
    %s27 = sld [smem:[#allocation2]]
    %v28 = vtanh.pop %v25
    %v29 = vtanh.pop %v26
    %v30 = vstv %s27
    %v31 = vmul.f32 %v30, %v28
    %v32 = vmul.f32 %v30, %v29
    %33 = vst [vmem:[#allocation6] sm:$0xff] %v31
    %34 = vst [vmem:[#allocation6 + $0x8] sm:$0xff] %v32
    // Predicated region
    $region14: #{tpu_custom_call.1} parent=1 // pred_check
      _
    $region15: #{tpu_custom_call.1} parent=1 // pred_check_branch
      %36 = sbr.rel (0) target = $region17
    $region16: #{tpu_custom_call.1} parent=1 // pred_region
      %s38 = ssub.s32 256, 256
      %39 = vsyncadd [#allocation5], %s38
      %s41 = sshll.u32 [#allocation6], 4
      %s42 = int_to_ptr.vmem [resolvable:$true] %s41
      %44 = dma.vmem_to_hbm [thread:$0]  %s42, 256, %s2, [#allocation5]
    $region17: #{tpu_custom_call.1} parent=1 // pred_fallthru
      _
    // Predicated region
    $region18: #{tpu_custom_call.1} parent=1 // pred_check
      _
    $region19: #{tpu_custom_call.1} parent=1 // pred_check_branch
      %46 = sbr.rel (0) target = $region21
    $region20: #{tpu_custom_call.1} parent=1 // pred_region
      %47 = dma.done [#allocation5], 256
    $region21: #{tpu_custom_call.1} parent=1 // pred_fallthru
      _
    %48 = vsyncpa [#allocation4], 1
    %49 = vsyncpa [#allocation5], 1

</llo_original>
